<compile_context>
chip_gen: v7x
topology: tpu7x:2x2x1
jax: 0.10.0
libtpu: 0.0.40
codegen_flags: <defaults>
</compile_context>

<pallas_src>
import functools

import jax
import jax.numpy as jnp
from jax.experimental import pallas as pl
from jax.experimental.pallas import tpu as pltpu

_LANE = 128          # lane-dense output width (>= 10 classes)
_NUM_CLASSES = 10
_MAX_TILE_B = 512    # rows per grid step (512 KiB of x per buffer)


def _round_up(n, m):
    return ((n + m - 1) // m) * m


def firstnet_kernel(
    x_ref,
    w0_ref, b0_ref,
    w1_ref, b1_ref,
    w2_ref, b2_ref,
    w3_ref, b3_ref,
    w4_ref, b4_ref,
    out_ref,
):
    """One batch tile: 5 dense+sigmoid layers + log_softmax, all VMEM-resident."""
    x = x_ref[...]                       # (TILE_B, image_size), already f32

    def dense_sigmoid(h, w_ref, b_ref):
        y = jnp.dot(h, w_ref[...], preferred_element_type=jnp.float32)
        return jax.nn.sigmoid(y + b_ref[...])   # bias is (1, out) -> broadcasts

    h = dense_sigmoid(x, w0_ref, b0_ref)   # (T, 128)
    h = dense_sigmoid(h, w1_ref, b1_ref)   # (T, 64)
    h = dense_sigmoid(h, w2_ref, b2_ref)   # (T, 10)
    h = dense_sigmoid(h, w3_ref, b3_ref)   # (T, 10)
    h = dense_sigmoid(h, w4_ref, b4_ref)   # (T, 10)

    # log_softmax along the class axis (10 real classes), numerically stable.
    m = jnp.max(h, axis=-1, keepdims=True)
    s = h - m
    lse = jnp.log(jnp.sum(jnp.exp(s), axis=-1, keepdims=True))
    logp = s - lse                         # (T, 10)

    # Lane-dense full-width store: pad class axis out to 128 with zeros.
    pad = jnp.zeros((logp.shape[0], _LANE - _NUM_CLASSES), jnp.float32)
    out_ref[...] = jnp.concatenate([logp, pad], axis=-1).astype(out_ref.dtype)


@functools.partial(jax.jit, static_argnames=("image_size",))
def firstnet_forward(x, params, *, image_size):
    """x: any shape with total elements divisible by image_size (e.g. NCHW)."""
    xf = jnp.reshape(x, (-1, image_size)).astype(jnp.float32)
    b = xf.shape[0]

    # Batch tile: large enough to hide per-step overhead, small enough to fit
    # comfortably in VMEM on every generation (v7x: 64 MiB per TC).
    tile_b = min(_MAX_TILE_B, _round_up(b, 8))
    b_pad = _round_up(b, tile_b)
    if b_pad != b:
        xf = jnp.pad(xf, ((0, b_pad - b), (0, 0)))

    layer_names = ("fc0", "fc1", "fc2", "fc3", "fc4")

    # Operands: x tile-streamed; weights/biases VMEM-resident (constant index_map).
    operands = [xf]
    in_specs = [pl.BlockSpec((tile_b, image_size), lambda i: (i, 0))]
    for name in layer_names:
        w, bias = params[name]
        operands.append(w)                                   # (in, out)
        operands.append(bias.reshape(1, -1))                 # (1, out)
        in_specs.append(pl.BlockSpec(w.shape, lambda i: (0, 0)))
        in_specs.append(pl.BlockSpec((1, w.shape[1]), lambda i: (0, 0)))

    # Advisory cost estimate: tiny FLOPs, dominated by streaming x from HBM.
    flops = 2 * b_pad * (image_size * 128 + 128 * 64 + 64 * 10 + 10 * 10 + 10 * 10)
    transcendentals = b_pad * (128 + 64 + 10 + 10 + 10 + 10)   # sigmoids + softmax exp
    weight_bytes = 4 * sum(
        params[n][0].size + params[n][1].size for n in layer_names
    )
    bytes_accessed = b_pad * (image_size * 4 + _LANE * 4) + weight_bytes

    out = pl.pallas_call(
        firstnet_kernel,
        grid=(b_pad // tile_b,),
        out_shape=jax.ShapeDtypeStruct((b_pad, _LANE), jnp.float32),
        in_specs=in_specs,
        out_specs=pl.BlockSpec((tile_b, _LANE), lambda i: (i, 0)),
        compiler_params=pltpu.CompilerParams(
            dimension_semantics=("parallel",),
        ),
        cost_estimate=pl.CostEstimate(
            flops=flops,
            transcendentals=transcendentals,
            bytes_accessed=bytes_accessed,
        ),
    )(*operands)

    return out[:b, :_NUM_CLASSES]


def init_firstnet_params(key, image_size):
    """Deterministic init mimicking torch.nn.Linear defaults:
    U(-1/sqrt(fan_in), 1/sqrt(fan_in)) for both weight and bias."""
    sizes = {
        "fc0": (image_size, 128),
        "fc1": (128, 64),
        "fc2": (64, 10),
        "fc3": (10, 10),
        "fc4": (10, 10),
        "fc5": (10, 10),  # defined in __init__ but unused in forward()
    }
    params = {}
    for name, (fan_in, fan_out) in sizes.items():
        key, kw, kb = jax.random.split(key, 3)
        bound = 1.0 / jnp.sqrt(jnp.float32(fan_in))
        w = jax.random.uniform(kw, (fan_in, fan_out), jnp.float32, -bound, bound)
        bias = jax.random.uniform(kb, (fan_out,), jnp.float32, -bound, bound)
        params[name] = (w, bias)
    return params


def firstnet_reference(x, params, image_size):
    """Pure-JAX reference for correctness checking."""
    h = jnp.reshape(x, (-1, image_size)).astype(jnp.float32)
    for name in ("fc0", "fc1", "fc2", "fc3", "fc4"):
        w, bias = params[name]
        h = jax.nn.sigmoid(h @ w + bias)
    return jax.nn.log_softmax(h, axis=1)


if __name__ == "__main__":
    # Small image-like input: (B=8, C=1, H=16, W=16) -> image_size = 256.
    B, C, H, W = 8, 1, 16, 16
    image_size = C * H * W

    key = jax.random.PRNGKey(0)
    key, kx = jax.random.split(key)
    x = jax.random.normal(kx, (B, C, H, W), jnp.float32)

    params = init_firstnet_params(key, image_size)

    out = firstnet_forward(x, params, image_size=image_size)
    out = jax.block_until_ready(out)

    ref = firstnet_reference(x, params, image_size)
    assert out.shape == (B, 10), out.shape
    assert jnp.allclose(out, ref, atol=1e-5, rtol=1e-5), "mismatch vs reference"
    # log_softmax rows should sum (in prob space) to ~1.
    assert jnp.allclose(jnp.sum(jnp.exp(out), axis=1), 1.0, atol=1e-5)

    print("KERNEL_OK")
</pallas_src>

<mosaic_0001>
module attributes {stable_mosaic.version = 11 : i64} {
  func.func @firstnet_kernel(%arg0: i32, %arg1: memref<8x256xf32, #tpu.memory_space<vmem>>, %arg2: memref<256x128xf32, #tpu.memory_space<vmem>>, %arg3: memref<1x128xf32, #tpu.memory_space<vmem>>, %arg4: memref<128x64xf32, #tpu.memory_space<vmem>>, %arg5: memref<1x64xf32, #tpu.memory_space<vmem>>, %arg6: memref<64x10xf32, #tpu.memory_space<vmem>>, %arg7: memref<1x10xf32, #tpu.memory_space<vmem>>, %arg8: memref<10x10xf32, #tpu.memory_space<vmem>>, %arg9: memref<1x10xf32, #tpu.memory_space<vmem>>, %arg10: memref<10x10xf32, #tpu.memory_space<vmem>>, %arg11: memref<1x10xf32, #tpu.memory_space<vmem>>, %arg12: memref<8x128xf32, #tpu.memory_space<vmem>>) attributes {dimension_semantics = [#tpu.dimension_semantics<parallel>], iteration_bounds = array<i64: 1>, scalar_prefetch = 0 : i64, scratch_operands = 0 : i64, tpu.core_type = #tpu.core_type<tc>, window_params = [{transform_indices = @transform_0, window_bounds = array<i64: 8, 256>}, {pipeline_mode = #tpu.pipeline_mode<synchronous>, transform_indices = @transform_1, window_bounds = array<i64: 256, 128>}, {pipeline_mode = #tpu.pipeline_mode<synchronous>, transform_indices = @transform_2, window_bounds = array<i64: 1, 128>}, {pipeline_mode = #tpu.pipeline_mode<synchronous>, transform_indices = @transform_3, window_bounds = array<i64: 128, 64>}, {pipeline_mode = #tpu.pipeline_mode<synchronous>, transform_indices = @transform_4, window_bounds = array<i64: 1, 64>}, {pipeline_mode = #tpu.pipeline_mode<synchronous>, transform_indices = @transform_5, window_bounds = array<i64: 64, 10>}, {pipeline_mode = #tpu.pipeline_mode<synchronous>, transform_indices = @transform_6, window_bounds = array<i64: 1, 10>}, {pipeline_mode = #tpu.pipeline_mode<synchronous>, transform_indices = @transform_7, window_bounds = array<i64: 10, 10>}, {pipeline_mode = #tpu.pipeline_mode<synchronous>, transform_indices = @transform_8, window_bounds = array<i64: 1, 10>}, {pipeline_mode = #tpu.pipeline_mode<synchronous>, transform_indices = @transform_9, window_bounds = array<i64: 10, 10>}, {pipeline_mode = #tpu.pipeline_mode<synchronous>, transform_indices = @transform_10, window_bounds = array<i64: 1, 10>}, {transform_indices = @transform_11, window_bounds = array<i64: 8, 128>}]} {
    %c0 = arith.constant 0 : index
    %c0_0 = arith.constant 0 : index
    %0 = vector.load %arg1[%c0, %c0_0] : memref<8x256xf32, #tpu.memory_space<vmem>>, vector<8x256xf32>
    %c0_1 = arith.constant 0 : index
    %c0_2 = arith.constant 0 : index
    %1 = vector.load %arg2[%c0_1, %c0_2] : memref<256x128xf32, #tpu.memory_space<vmem>>, vector<256x128xf32>
    %cst = arith.constant dense<0.000000e+00> : vector<8x128xf32>
    %2 = tpu.matmul %0, %1, %cst {dimension_numbers = #tpu.dot_dimension_numbers<[1], [0], [0], [1], [0, 0, 1, 1], [], []>} : vector<8x256xf32>, vector<256x128xf32>, vector<8x128xf32> -> vector<8x128xf32>
    %c0_3 = arith.constant 0 : index
    %c0_4 = arith.constant 0 : index
    %3 = vector.load %arg3[%c0_3, %c0_4] : memref<1x128xf32, #tpu.memory_space<vmem>>, vector<1x128xf32>
    %4 = vector.broadcast %3 : vector<1x128xf32> to vector<8x128xf32>
    %5 = arith.addf %2, %4 : vector<8x128xf32>
    %6 = arith.negf %5 : vector<8x128xf32>
    %7 = math.exp %6 : vector<8x128xf32>
    %cst_5 = arith.constant 1.000000e+00 : f32
    %8 = vector.broadcast %cst_5 : f32 to vector<8x128xf32>
    %9 = arith.addf %8, %7 : vector<8x128xf32>
    %10 = arith.divf %8, %9 : vector<8x128xf32>
    %c0_6 = arith.constant 0 : index
    %c0_7 = arith.constant 0 : index
    %11 = vector.load %arg4[%c0_6, %c0_7] : memref<128x64xf32, #tpu.memory_space<vmem>>, vector<128x64xf32>
    %cst_8 = arith.constant dense<0.000000e+00> : vector<8x64xf32>
    %12 = tpu.matmul %10, %11, %cst_8 {dimension_numbers = #tpu.dot_dimension_numbers<[1], [0], [0], [1], [0, 0, 1, 1], [], []>} : vector<8x128xf32>, vector<128x64xf32>, vector<8x64xf32> -> vector<8x64xf32>
    %c0_9 = arith.constant 0 : index
    %c0_10 = arith.constant 0 : index
    %13 = vector.load %arg5[%c0_9, %c0_10] : memref<1x64xf32, #tpu.memory_space<vmem>>, vector<1x64xf32>
    %14 = vector.broadcast %13 : vector<1x64xf32> to vector<8x64xf32>
    %15 = arith.addf %12, %14 : vector<8x64xf32>
    %16 = arith.negf %15 : vector<8x64xf32>
    %17 = math.exp %16 : vector<8x64xf32>
    %cst_11 = arith.constant 1.000000e+00 : f32
    %18 = vector.broadcast %cst_11 : f32 to vector<8x64xf32>
    %19 = arith.addf %18, %17 : vector<8x64xf32>
    %20 = arith.divf %18, %19 : vector<8x64xf32>
    %c0_12 = arith.constant 0 : index
    %c0_13 = arith.constant 0 : index
    %21 = vector.load %arg6[%c0_12, %c0_13] : memref<64x10xf32, #tpu.memory_space<vmem>>, vector<64x10xf32>
    %cst_14 = arith.constant dense<0.000000e+00> : vector<8x10xf32>
    %22 = tpu.matmul %20, %21, %cst_14 {dimension_numbers = #tpu.dot_dimension_numbers<[1], [0], [0], [1], [0, 0, 1, 1], [], []>} : vector<8x64xf32>, vector<64x10xf32>, vector<8x10xf32> -> vector<8x10xf32>
    %c0_15 = arith.constant 0 : index
    %c0_16 = arith.constant 0 : index
    %23 = vector.load %arg7[%c0_15, %c0_16] : memref<1x10xf32, #tpu.memory_space<vmem>>, vector<1x10xf32>
    %24 = vector.broadcast %23 : vector<1x10xf32> to vector<8x10xf32>
    %25 = arith.addf %22, %24 : vector<8x10xf32>
    %26 = arith.negf %25 : vector<8x10xf32>
    %27 = math.exp %26 : vector<8x10xf32>
    %cst_17 = arith.constant 1.000000e+00 : f32
    %28 = vector.broadcast %cst_17 : f32 to vector<8x10xf32>
    %29 = arith.addf %28, %27 : vector<8x10xf32>
    %30 = arith.divf %28, %29 : vector<8x10xf32>
    %c0_18 = arith.constant 0 : index
    %c0_19 = arith.constant 0 : index
    %31 = vector.load %arg8[%c0_18, %c0_19] : memref<10x10xf32, #tpu.memory_space<vmem>>, vector<10x10xf32>
    %cst_20 = arith.constant dense<0.000000e+00> : vector<8x10xf32>
    %32 = tpu.matmul %30, %31, %cst_20 {dimension_numbers = #tpu.dot_dimension_numbers<[1], [0], [0], [1], [0, 0, 1, 1], [], []>} : vector<8x10xf32>, vector<10x10xf32>, vector<8x10xf32> -> vector<8x10xf32>
    %c0_21 = arith.constant 0 : index
    %c0_22 = arith.constant 0 : index
    %33 = vector.load %arg9[%c0_21, %c0_22] : memref<1x10xf32, #tpu.memory_space<vmem>>, vector<1x10xf32>
    %34 = vector.broadcast %33 : vector<1x10xf32> to vector<8x10xf32>
    %35 = arith.addf %32, %34 : vector<8x10xf32>
    %36 = arith.negf %35 : vector<8x10xf32>
    %37 = math.exp %36 : vector<8x10xf32>
    %cst_23 = arith.constant 1.000000e+00 : f32
    %38 = vector.broadcast %cst_23 : f32 to vector<8x10xf32>
    %39 = arith.addf %38, %37 : vector<8x10xf32>
    %40 = arith.divf %38, %39 : vector<8x10xf32>
    %c0_24 = arith.constant 0 : index
    %c0_25 = arith.constant 0 : index
    %41 = vector.load %arg10[%c0_24, %c0_25] : memref<10x10xf32, #tpu.memory_space<vmem>>, vector<10x10xf32>
    %cst_26 = arith.constant dense<0.000000e+00> : vector<8x10xf32>
    %42 = tpu.matmul %40, %41, %cst_26 {dimension_numbers = #tpu.dot_dimension_numbers<[1], [0], [0], [1], [0, 0, 1, 1], [], []>} : vector<8x10xf32>, vector<10x10xf32>, vector<8x10xf32> -> vector<8x10xf32>
    %c0_27 = arith.constant 0 : index
    %c0_28 = arith.constant 0 : index
    %43 = vector.load %arg11[%c0_27, %c0_28] : memref<1x10xf32, #tpu.memory_space<vmem>>, vector<1x10xf32>
    %44 = vector.broadcast %43 : vector<1x10xf32> to vector<8x10xf32>
    %45 = arith.addf %42, %44 : vector<8x10xf32>
    %46 = arith.negf %45 : vector<8x10xf32>
    %47 = math.exp %46 : vector<8x10xf32>
    %cst_29 = arith.constant 1.000000e+00 : f32
    %48 = vector.broadcast %cst_29 : f32 to vector<8x10xf32>
    %49 = arith.addf %48, %47 : vector<8x10xf32>
    %50 = arith.divf %48, %49 : vector<8x10xf32>
    %cst_30 = arith.constant dense<0xFF800000> : vector<8xf32>
    %51 = vector.multi_reduction <maximumf>, %50, %cst_30 [1] : vector<8x10xf32> to vector<8xf32>
    %52 = vector.shape_cast %51 : vector<8xf32> to vector<8x1xf32>
    %53 = vector.broadcast %52 : vector<8x1xf32> to vector<8x10xf32>
    %54 = arith.subf %50, %53 : vector<8x10xf32>
    %55 = math.exp %54 : vector<8x10xf32>
    %cst_31 = arith.constant dense<0.000000e+00> : vector<8xf32>
    %56 = vector.multi_reduction <add>, %55, %cst_31 [1] : vector<8x10xf32> to vector<8xf32>
    %57 = vector.shape_cast %56 : vector<8xf32> to vector<8x1xf32>
    %58 = math.log %57 : vector<8x1xf32>
    %59 = vector.broadcast %58 : vector<8x1xf32> to vector<8x10xf32>
    %60 = arith.subf %54, %59 : vector<8x10xf32>
    %cst_32 = arith.constant 0.000000e+00 : f32
    %61 = vector.broadcast %cst_32 : f32 to vector<8x118xf32>
    %62 = tpu.concatenate %60, %61 in 1 : vector<8x10xf32>, vector<8x118xf32> -> vector<8x128xf32>
    %c0_33 = arith.constant 0 : index
    %c0_34 = arith.constant 0 : index
    %63 = vector.load %arg12[%c0_33, %c0_34] : memref<8x128xf32, #tpu.memory_space<vmem>>, vector<8x128xf32>
    tpu.vector_store %arg12[%c0_33, %c0_34], %62 {strides = array<i32>} : memref<8x128xf32, #tpu.memory_space<vmem>>, vector<8x128xf32>,
    return
  }
  func.func @transform_0(%arg0: i32) -> (i32, i32) {
    %c0_i32 = arith.constant 0 : i32
    %c0_i32_0 = arith.constant 0 : i32
    return %arg0, %c0_i32 : i32, i32
  }
  func.func @transform_1(%arg0: i32) -> (i32, i32) {
    %c0_i32 = arith.constant 0 : i32
    %c0_i32_0 = arith.constant 0 : i32
    %c0_i32_1 = arith.constant 0 : i32
    return %c0_i32, %c0_i32_0 : i32, i32
  }
  func.func @transform_2(%arg0: i32) -> (i32, i32) {
    %c0_i32 = arith.constant 0 : i32
    %c0_i32_0 = arith.constant 0 : i32
    %c0_i32_1 = arith.constant 0 : i32
    return %c0_i32, %c0_i32_0 : i32, i32
  }
  func.func @transform_3(%arg0: i32) -> (i32, i32) {
    %c0_i32 = arith.constant 0 : i32
    %c0_i32_0 = arith.constant 0 : i32
    %c0_i32_1 = arith.constant 0 : i32
    return %c0_i32, %c0_i32_0 : i32, i32
  }
  func.func @transform_4(%arg0: i32) -> (i32, i32) {
    %c0_i32 = arith.constant 0 : i32
    %c0_i32_0 = arith.constant 0 : i32
    %c0_i32_1 = arith.constant 0 : i32
    return %c0_i32, %c0_i32_0 : i32, i32
  }
  func.func @transform_5(%arg0: i32) -> (i32, i32) {
    %c0_i32 = arith.constant 0 : i32
    %c0_i32_0 = arith.constant 0 : i32
    %c0_i32_1 = arith.constant 0 : i32
    return %c0_i32, %c0_i32_0 : i32, i32
  }
  func.func @transform_6(%arg0: i32) -> (i32, i32) {
    %c0_i32 = arith.constant 0 : i32
    %c0_i32_0 = arith.constant 0 : i32
    %c0_i32_1 = arith.constant 0 : i32
    return %c0_i32, %c0_i32_0 : i32, i32
  }
  func.func @transform_7(%arg0: i32) -> (i32, i32) {
    %c0_i32 = arith.constant 0 : i32
    %c0_i32_0 = arith.constant 0 : i32
    %c0_i32_1 = arith.constant 0 : i32
    return %c0_i32, %c0_i32_0 : i32, i32
  }
  func.func @transform_8(%arg0: i32) -> (i32, i32) {
    %c0_i32 = arith.constant 0 : i32
    %c0_i32_0 = arith.constant 0 : i32
    %c0_i32_1 = arith.constant 0 : i32
    return %c0_i32, %c0_i32_0 : i32, i32
  }
  func.func @transform_9(%arg0: i32) -> (i32, i32) {
    %c0_i32 = arith.constant 0 : i32
    %c0_i32_0 = arith.constant 0 : i32
    %c0_i32_1 = arith.constant 0 : i32
    return %c0_i32, %c0_i32_0 : i32, i32
  }
  func.func @transform_10(%arg0: i32) -> (i32, i32) {
    %c0_i32 = arith.constant 0 : i32
    %c0_i32_0 = arith.constant 0 : i32
    %c0_i32_1 = arith.constant 0 : i32
    return %c0_i32, %c0_i32_0 : i32, i32
  }
  func.func @transform_11(%arg0: i32) -> (i32, i32) {
    %c0_i32 = arith.constant 0 : i32
    %c0_i32_0 = arith.constant 0 : i32
    return %arg0, %c0_i32 : i32, i32
  }
}

</mosaic_0001>

<llo_original>
// kernel: firstnet_forward.1
$region0: #{firstnet_forward.1}
  #allocation0 [shape = 'u32[]', space=smem, size = 0x4, offset = 0x4, fixed_abs, tag = 'smem constant byte address 0x4 - core index']
  #allocation1 [shape = 'u32[144,128]{1,0:T(1,128)}', space=vmem, size = 0x12000, scoped, tag = 'internal scratch']
  %s0 = inlined_call_operand.vmem [shape: f32[8,256], index: 0, kind: input, shape index: {}]
  %s1 = inlined_call_operand.vmem [shape: f32[256,128], index: 1, kind: input, shape index: {}]
  %s2 = inlined_call_operand.vmem [shape: f32[1,128], index: 2, kind: input, shape index: {}]
  %s3 = inlined_call_operand.vmem [shape: f32[128,64], index: 3, kind: input, shape index: {}]
  %s4 = inlined_call_operand.vmem [shape: f32[1,64], index: 4, kind: input, shape index: {}]
  %s5 = inlined_call_operand.vmem [shape: f32[64,10], index: 5, kind: input, shape index: {}]
  %s6 = inlined_call_operand.vmem [shape: f32[1,10], index: 6, kind: input, shape index: {}]
  %s7 = inlined_call_operand.vmem [shape: f32[10,10], index: 7, kind: input, shape index: {}]
  %s8 = inlined_call_operand.vmem [shape: f32[1,10], index: 8, kind: input, shape index: {}]
  %s9 = inlined_call_operand.vmem [shape: f32[10,10], index: 9, kind: input, shape index: {}]
  %s10 = inlined_call_operand.vmem [shape: f32[1,10], index: 10, kind: input, shape index: {}]
  %s11 = inlined_call_operand.hbm [shape: f32[8,128], index: 11, kind: output, shape index: {}]
  %s12 = sld [smem:[#allocation0]]
  $region54: #{firstnet_forward.1} parent=0
    _
  %s14 = ssub.s32 1, %s12
  %s15 = scalar_select 0, %s14, %s12
  $region1: #{firstnet_forward.1} parent=0
    #allocation2 [shape = 'u8[4096]{0}', space=vmem, size = 0x1000, scoped, tag = 'output window, operand 0, single buffered']
    #allocation3 [shape = 's32[1]{0}', space=sflag, size = 0x4, scoped, tag = 'scoped memory for firstnet_forward.1']
    %16 = vsyncpa [#allocation3], 0
    // Predicated region
    $region2: #{firstnet_forward.1} parent=1 // pred_check
      _
    $region3: #{firstnet_forward.1} parent=1 // pred_check_branch
      %18 = sbr.rel (0) target = $region5
    $region4: #{firstnet_forward.1} parent=1 // pred_region
      _
    $region5: #{firstnet_forward.1} parent=1 // pred_fallthru
      _
    // Predicated region
    $region6: #{firstnet_forward.1} parent=1 // pred_check
      _
    $region7: #{firstnet_forward.1} parent=1 // pred_check_branch
      %20 = sbr.rel (0) target = $region9
    $region8: #{firstnet_forward.1} parent=1 // pred_region
      _
    $region9: #{firstnet_forward.1} parent=1 // pred_fallthru
      _
    // Predicated region
    $region10: #{firstnet_forward.1} parent=1 // pred_check
      _
    $region11: #{firstnet_forward.1} parent=1 // pred_check_branch
      %22 = sbr.rel (0) target = $region13
    $region12: #{firstnet_forward.1} parent=1 // pred_region
      _
    $region13: #{firstnet_forward.1} parent=1 // pred_fallthru
      _
    // Predicated region
    $region14: #{firstnet_forward.1} parent=1 // pred_check
      _
    $region15: #{firstnet_forward.1} parent=1 // pred_check_branch
      %24 = sbr.rel (0) target = $region17
    $region16: #{firstnet_forward.1} parent=1 // pred_region
      _
    $region17: #{firstnet_forward.1} parent=1 // pred_fallthru
      _
    // Predicated region
    $region18: #{firstnet_forward.1} parent=1 // pred_check
      _
    $region19: #{firstnet_forward.1} parent=1 // pred_check_branch
      %26 = sbr.rel (0) target = $region21
    $region20: #{firstnet_forward.1} parent=1 // pred_region
      _
    $region21: #{firstnet_forward.1} parent=1 // pred_fallthru
      _
    // Predicated region
    $region22: #{firstnet_forward.1} parent=1 // pred_check
      _
    $region23: #{firstnet_forward.1} parent=1 // pred_check_branch
      %28 = sbr.rel (0) target = $region25
    $region24: #{firstnet_forward.1} parent=1 // pred_region
      _
    $region25: #{firstnet_forward.1} parent=1 // pred_fallthru
      _
    // Predicated region
    $region26: #{firstnet_forward.1} parent=1 // pred_check
      _
    $region27: #{firstnet_forward.1} parent=1 // pred_check_branch
      %30 = sbr.rel (0) target = $region29
    $region28: #{firstnet_forward.1} parent=1 // pred_region
      _
    $region29: #{firstnet_forward.1} parent=1 // pred_fallthru
      _
    // Predicated region
    $region30: #{firstnet_forward.1} parent=1 // pred_check
      _
    $region31: #{firstnet_forward.1} parent=1 // pred_check_branch
      %32 = sbr.rel (0) target = $region33
    $region32: #{firstnet_forward.1} parent=1 // pred_region
      _
    $region33: #{firstnet_forward.1} parent=1 // pred_fallthru
      _
    // Predicated region
    $region34: #{firstnet_forward.1} parent=1 // pred_check
      _
    $region35: #{firstnet_forward.1} parent=1 // pred_check_branch
      %34 = sbr.rel (0) target = $region37
    $region36: #{firstnet_forward.1} parent=1 // pred_region
      _
    $region37: #{firstnet_forward.1} parent=1 // pred_fallthru
      _
    // Predicated region
    $region38: #{firstnet_forward.1} parent=1 // pred_check
      _
    $region39: #{firstnet_forward.1} parent=1 // pred_check_branch
      %36 = sbr.rel (0) target = $region41
    $region40: #{firstnet_forward.1} parent=1 // pred_region
      _
    $region41: #{firstnet_forward.1} parent=1 // pred_fallthru
      _
    // Predicated region
    $region42: #{firstnet_forward.1} parent=1 // pred_check
      _
    $region43: #{firstnet_forward.1} parent=1 // pred_check_branch
      %38 = sbr.rel (0) target = $region45
    $region44: #{firstnet_forward.1} parent=1 // pred_region
      _
    $region45: #{firstnet_forward.1} parent=1 // pred_fallthru
      _
    %v39 = vld [vmem:[%s0] sm:$0xff]
    %v40 = vld [vmem:[%s0 + $0x8] sm:$0xff]
    %v41 = vld [vmem:[%s1] sm:$0xff]
    %v42 = vld [vmem:[%s1 + $0x8] sm:$0xff]
    %v43 = vld [vmem:[%s1 + $0x10] sm:$0xff]
    %v44 = vld [vmem:[%s1 + $0x18] sm:$0xff]
    %v45 = vld [vmem:[%s1 + $0x20] sm:$0xff]
    %v46 = vld [vmem:[%s1 + $0x28] sm:$0xff]
    %v47 = vld [vmem:[%s1 + $0x30] sm:$0xff]
    %v48 = vld [vmem:[%s1 + $0x38] sm:$0xff]
    %v49 = vld [vmem:[%s1 + $0x40] sm:$0xff]
    %v50 = vld [vmem:[%s1 + $0x48] sm:$0xff]
    %v51 = vld [vmem:[%s1 + $0x50] sm:$0xff]
    %v52 = vld [vmem:[%s1 + $0x58] sm:$0xff]
    %v53 = vld [vmem:[%s1 + $0x60] sm:$0xff]
    %v54 = vld [vmem:[%s1 + $0x68] sm:$0xff]
    %v55 = vld [vmem:[%s1 + $0x70] sm:$0xff]
    %v56 = vld [vmem:[%s1 + $0x78] sm:$0xff]
    %v57 = vld [vmem:[%s1 + $0x80] sm:$0xff]
    %v58 = vld [vmem:[%s1 + $0x88] sm:$0xff]
    %v59 = vld [vmem:[%s1 + $0x90] sm:$0xff]
    %v60 = vld [vmem:[%s1 + $0x98] sm:$0xff]
    %v61 = vld [vmem:[%s1 + $0xa0] sm:$0xff]
    %v62 = vld [vmem:[%s1 + $0xa8] sm:$0xff]
    %v63 = vld [vmem:[%s1 + $0xb0] sm:$0xff]
    %v64 = vld [vmem:[%s1 + $0xb8] sm:$0xff]
    %v65 = vld [vmem:[%s1 + $0xc0] sm:$0xff]
    %v66 = vld [vmem:[%s1 + $0xc8] sm:$0xff]
    %v67 = vld [vmem:[%s1 + $0xd0] sm:$0xff]
    %v68 = vld [vmem:[%s1 + $0xd8] sm:$0xff]
    %v69 = vld [vmem:[%s1 + $0xe0] sm:$0xff]
    %v70 = vld [vmem:[%s1 + $0xe8] sm:$0xff]
    %v71 = vld [vmem:[%s1 + $0xf0] sm:$0xff]
    %v72 = vld [vmem:[%s1 + $0xf8] sm:$0xff]
    %v73 = vld [vmem:[%s2] sm:$0x1]
    %v75 = vlaneseq
    %v76 = vshrl.u32 %v75, 7
    %v77 = vsub.s32 0, %v76
    %v78 = vrot.slane %v73, %v77
    %80 = vmatprep.subr.mxu0 0.0
    %81 = vmatpush1.msra.mxu0 %v41
    %82 = vmatprep.subr.mxu0 0.0
    %83 = vmatpush1.msra.mxu0 %v42
    %84 = vmatprep.subr.mxu0 0.0
    %85 = vmatpush1.msra.mxu0 %v43
    %86 = vmatprep.subr.mxu0 0.0
    %87 = vmatpush1.msra.mxu0 %v44
    %88 = vmatprep.subr.mxu0 0.0
    %89 = vmatpush1.msra.mxu0 %v45
    %90 = vmatprep.subr.mxu0 0.0
    %91 = vmatpush1.msra.mxu0 %v46
    %92 = vmatprep.subr.mxu0 0.0
    %93 = vmatpush1.msra.mxu0 %v47
    %94 = vmatprep.subr.mxu0 0.0
    %95 = vmatpush1.msra.mxu0 %v48
    %96 = vmatprep.subr.mxu0 0.0
    %97 = vmatpush1.msra.mxu0 %v49
    %98 = vmatprep.subr.mxu0 0.0
    %99 = vmatpush1.msra.mxu0 %v50
    %100 = vmatprep.subr.mxu0 0.0
    %101 = vmatpush1.msra.mxu0 %v51
    %102 = vmatprep.subr.mxu0 0.0
    %103 = vmatpush1.msra.mxu0 %v52
    %104 = vmatprep.subr.mxu0 0.0
    %105 = vmatpush1.msra.mxu0 %v53
    %106 = vmatprep.subr.mxu0 0.0
    %107 = vmatpush1.msra.mxu0 %v54
    %108 = vmatprep.subr.mxu0 0.0
    %109 = vmatpush1.msra.mxu0 %v55
    %110 = vmatprep.subr.mxu0 0.0
    %111 = vmatpush1.msra.mxu0 %v56
    %112 = vmatprep.subr.mxu0 0.0
    %113 = vmatpush1.msra.mxu0 %v57
    %114 = vmatprep.subr.mxu0 0.0
    %115 = vmatpush1.msra.mxu0 %v58
    %116 = vmatprep.subr.mxu0 0.0
    %117 = vmatpush1.msra.mxu0 %v59
    %118 = vmatprep.subr.mxu0 0.0
    %119 = vmatpush1.msra.mxu0 %v60
    %120 = vmatprep.subr.mxu0 0.0
    %121 = vmatpush1.msra.mxu0 %v61
    %122 = vmatprep.subr.mxu0 0.0
    %123 = vmatpush1.msra.mxu0 %v62
    %124 = vmatprep.subr.mxu0 0.0
    %125 = vmatpush1.msra.mxu0 %v63
    %126 = vmatprep.subr.mxu0 0.0
    %127 = vmatpush1.msra.mxu0 %v64
    %128 = vmatprep.subr.mxu0 0.0
    %129 = vmatpush1.msra.mxu0 %v65
    %130 = vmatprep.subr.mxu0 0.0
    %131 = vmatpush1.msra.mxu0 %v66
    %132 = vmatprep.subr.mxu0 0.0
    %133 = vmatpush1.msra.mxu0 %v67
    %134 = vmatprep.subr.mxu0 0.0
    %135 = vmatpush1.msra.mxu0 %v68
    %136 = vmatprep.subr.mxu0 0.0
    %137 = vmatpush1.msra.mxu0 %v69
    %138 = vmatprep.subr.mxu0 0.0
    %139 = vmatpush1.msra.mxu0 %v70
    %140 = vmatprep.subr.mxu0 0.0
    %141 = vmatpush1.msra.mxu0 %v71
    %142 = vmatprep.subr.mxu0 0.0
    %143 = vmatpush1.msra.mxu0 %v72
    %144 = vmatprep.mubr.f32.mxu0 %v40
    %145 = vmatmul.mubr.f32.gmra.mrb[0].mxu0 %v39
    %v146 = vpop.f32.mrb[0].mxu0
    %v147 = vadd.f32 %v78, %v146
    %v148 = vpop.f32.mrb[0].mxu0
    %149 = vdwg.mxu0
    %v150 = vxor.u32 %v147, 2147483648
    %v151 = vmul.f32 %v150, 1.442695
    %v152 = vpow.pop %v151
    %v153 = vadd.f32 %v152, 1.0
    %v154 = vrcp.pop %v153
    %v155 = vmul.f32 1.0, %v154
    %v156 = vld [vmem:[%s3] sm:$0xff]
    %v157 = vld [vmem:[%s3 + $0x8] sm:$0xff]
    %v158 = vld [vmem:[%s3 + $0x10] sm:$0xff]
    %v159 = vld [vmem:[%s3 + $0x18] sm:$0xff]
    %v160 = vld [vmem:[%s3 + $0x20] sm:$0xff]
    %v161 = vld [vmem:[%s3 + $0x28] sm:$0xff]
    %v162 = vld [vmem:[%s3 + $0x30] sm:$0xff]
    %v163 = vld [vmem:[%s3 + $0x38] sm:$0xff]
    %v164 = vld [vmem:[%s3 + $0x40] sm:$0xff]
    %v165 = vld [vmem:[%s3 + $0x48] sm:$0xff]
    %v166 = vld [vmem:[%s3 + $0x50] sm:$0xff]
    %v167 = vld [vmem:[%s3 + $0x58] sm:$0xff]
    %v168 = vld [vmem:[%s3 + $0x60] sm:$0xff]
    %v169 = vld [vmem:[%s3 + $0x68] sm:$0xff]
    %v170 = vld [vmem:[%s3 + $0x70] sm:$0xff]
    %v171 = vld [vmem:[%s3 + $0x78] sm:$0xff]
    %v172 = vld [vmem:[%s4] sm:$0x1]
    %v174 = vlaneseq
    %v175 = vshrl.u32 %v174, 7
    %v176 = vsub.s32 0, %v175
    %v177 = vrot.slane %v172, %v176
    %179 = vmatprep.subr.mxu0 0.0
    %180 = vmatpush1.msra.mxu0 %v156
    %181 = vmatprep.subr.mxu0 0.0
    %182 = vmatpush1.msra.mxu0 %v157
    %183 = vmatprep.subr.mxu0 0.0
    %184 = vmatpush1.msra.mxu0 %v158
    %185 = vmatprep.subr.mxu0 0.0
    %186 = vmatpush1.msra.mxu0 %v159
    %187 = vmatprep.subr.mxu0 0.0
    %188 = vmatpush1.msra.mxu0 %v160
    %189 = vmatprep.subr.mxu0 0.0
    %190 = vmatpush1.msra.mxu0 %v161
    %191 = vmatprep.subr.mxu0 0.0
    %192 = vmatpush1.msra.mxu0 %v162
    %193 = vmatprep.subr.mxu0 0.0
    %194 = vmatpush1.msra.mxu0 %v163
    %195 = vmatprep.subr.mxu0 0.0
    %196 = vmatpush1.msra.mxu0 %v164
    %197 = vmatprep.subr.mxu0 0.0
    %198 = vmatpush1.msra.mxu0 %v165
    %199 = vmatprep.subr.mxu0 0.0
    %200 = vmatpush1.msra.mxu0 %v166
    %201 = vmatprep.subr.mxu0 0.0
    %202 = vmatpush1.msra.mxu0 %v167
    %203 = vmatprep.subr.mxu0 0.0
    %204 = vmatpush1.msra.mxu0 %v168
    %205 = vmatprep.subr.mxu0 0.0
    %206 = vmatpush1.msra.mxu0 %v169
    %207 = vmatprep.subr.mxu0 0.0
    %208 = vmatpush1.msra.mxu0 %v170
    %209 = vmatprep.subr.mxu0 0.0
    %210 = vmatpush1.msra.mxu0 %v171
    %211 = vmatprep.subr.mxu0 0.0
    %212 = vmatpush1.msra.mxu0 0.0
    %213 = vmatprep.subr.mxu0 0.0
    %214 = vmatpush1.msra.mxu0 0.0
    %215 = vmatprep.subr.mxu0 0.0
    %216 = vmatpush1.msra.mxu0 0.0
    %217 = vmatprep.subr.mxu0 0.0
    %218 = vmatpush1.msra.mxu0 0.0
    %219 = vmatprep.subr.mxu0 0.0
    %220 = vmatpush1.msra.mxu0 0.0
    %221 = vmatprep.subr.mxu0 0.0
    %222 = vmatpush1.msra.mxu0 0.0
    %223 = vmatprep.subr.mxu0 0.0
    %224 = vmatpush1.msra.mxu0 0.0
    %225 = vmatprep.subr.mxu0 0.0
    %226 = vmatpush1.msra.mxu0 0.0
    %227 = vmatprep.subr.mxu0 0.0
    %228 = vmatpush1.msra.mxu0 0.0
    %229 = vmatprep.subr.mxu0 0.0
    %230 = vmatpush1.msra.mxu0 0.0
    %231 = vmatprep.subr.mxu0 0.0
    %232 = vmatpush1.msra.mxu0 0.0
    %233 = vmatprep.subr.mxu0 0.0
    %234 = vmatpush1.msra.mxu0 0.0
    %235 = vmatprep.subr.mxu0 0.0
    %236 = vmatpush1.msra.mxu0 0.0
    %237 = vmatprep.subr.mxu0 0.0
    %238 = vmatpush1.msra.mxu0 0.0
    %239 = vmatprep.subr.mxu0 0.0
    %240 = vmatpush1.msra.mxu0 0.0
    %241 = vmatprep.subr.mxu0 0.0
    %242 = vmatpush1.msra.mxu0 0.0
    %243 = vmatprep.mubr.f32.mxu0 0.0
    %244 = vmatmul.mubr.f32.gmra.mrb[0].mxu0 %v155
    %v245 = vpop.f32.mrb[0].mxu0
    %v246 = vadd.f32 %v177, %v245
    %v247 = vpop.f32.mrb[0].mxu0
    %248 = vdwg.mxu0
    %v249 = vxor.u32 %v246, 2147483648
    %v250 = vmul.f32 %v249, 1.442695
    %v251 = vpow.pop %v250
    %v252 = vadd.f32 %v251, 1.0
    %v253 = vrcp.pop %v252
    %v254 = vmul.f32 1.0, %v253
    %v255 = vld [vmem:[%s5] sm:$0xff]
    %v256 = vld [vmem:[%s5 + $0x8] sm:$0xff]
    %v257 = vld [vmem:[%s5 + $0x10] sm:$0xff]
    %v258 = vld [vmem:[%s5 + $0x18] sm:$0xff]
    %v259 = vld [vmem:[%s5 + $0x20] sm:$0xff]
    %v260 = vld [vmem:[%s5 + $0x28] sm:$0xff]
    %v261 = vld [vmem:[%s5 + $0x30] sm:$0xff]
    %v262 = vld [vmem:[%s5 + $0x38] sm:$0xff]
    %v263 = vld [vmem:[%s6] sm:$0x1]
    %v265 = vlaneseq
    %v266 = vshrl.u32 %v265, 7
    %v267 = vsub.s32 0, %v266
    %v268 = vrot.slane %v263, %v267
    %vm270 = vcmask 523264
    %v272 = vsel %vm270, %v254, 0
    %274 = vmatprep.subr.mxu0 0.0
    %275 = vmatpush1.msra.mxu0 %v255
    %276 = vmatprep.subr.mxu0 0.0
    %277 = vmatpush1.msra.mxu0 %v256
    %278 = vmatprep.subr.mxu0 0.0
    %279 = vmatpush1.msra.mxu0 %v257
    %280 = vmatprep.subr.mxu0 0.0
    %281 = vmatpush1.msra.mxu0 %v258
    %282 = vmatprep.subr.mxu0 0.0
    %283 = vmatpush1.msra.mxu0 %v259
    %284 = vmatprep.subr.mxu0 0.0
    %285 = vmatpush1.msra.mxu0 %v260
    %286 = vmatprep.subr.mxu0 0.0
    %287 = vmatpush1.msra.mxu0 %v261
    %288 = vmatprep.subr.mxu0 0.0
    %289 = vmatpush1.msra.mxu0 %v262
    %290 = vmatprep.subr.mxu0 0.0
    %291 = vmatpush1.msra.mxu0 0.0
    %292 = vmatprep.subr.mxu0 0.0
    %293 = vmatpush1.msra.mxu0 0.0
    %294 = vmatprep.subr.mxu0 0.0
    %295 = vmatpush1.msra.mxu0 0.0
    %296 = vmatprep.subr.mxu0 0.0
    %297 = vmatpush1.msra.mxu0 0.0
    %298 = vmatprep.subr.mxu0 0.0
    %299 = vmatpush1.msra.mxu0 0.0
    %300 = vmatprep.subr.mxu0 0.0
    %301 = vmatpush1.msra.mxu0 0.0
    %302 = vmatprep.subr.mxu0 0.0
    %303 = vmatpush1.msra.mxu0 0.0
    %304 = vmatprep.subr.mxu0 0.0
    %305 = vmatpush1.msra.mxu0 0.0
    %306 = vmatprep.subr.mxu0 0.0
    %307 = vmatpush1.msra.mxu0 0.0
    %308 = vmatprep.subr.mxu0 0.0
    %309 = vmatpush1.msra.mxu0 0.0
    %310 = vmatprep.subr.mxu0 0.0
    %311 = vmatpush1.msra.mxu0 0.0
    %312 = vmatprep.subr.mxu0 0.0
    %313 = vmatpush1.msra.mxu0 0.0
    %314 = vmatprep.subr.mxu0 0.0
    %315 = vmatpush1.msra.mxu0 0.0
    %316 = vmatprep.subr.mxu0 0.0
    %317 = vmatpush1.msra.mxu0 0.0
    %318 = vmatprep.subr.mxu0 0.0
    %319 = vmatpush1.msra.mxu0 0.0
    %320 = vmatprep.subr.mxu0 0.0
    %321 = vmatpush1.msra.mxu0 0.0
    %322 = vmatprep.subr.mxu0 0.0
    %323 = vmatpush1.msra.mxu0 0.0
    %324 = vmatprep.subr.mxu0 0.0
    %325 = vmatpush1.msra.mxu0 0.0
    %326 = vmatprep.subr.mxu0 0.0
    %327 = vmatpush1.msra.mxu0 0.0
    %328 = vmatprep.subr.mxu0 0.0
    %329 = vmatpush1.msra.mxu0 0.0
    %330 = vmatprep.subr.mxu0 0.0
    %331 = vmatpush1.msra.mxu0 0.0
    %332 = vmatprep.subr.mxu0 0.0
    %333 = vmatpush1.msra.mxu0 0.0
    %334 = vmatprep.subr.mxu0 0.0
    %335 = vmatpush1.msra.mxu0 0.0
    %336 = vmatprep.subr.mxu0 0.0
    %337 = vmatpush1.msra.mxu0 0.0
    %338 = vmatprep.mubr.f32.mxu0 0.0
    %339 = vmatmul.mubr.f32.gmra.mrb[0].mxu0 %v272
    %v340 = vpop.f32.mrb[0].mxu0
    %v341 = vadd.f32 %v268, %v340
    %v342 = vpop.f32.mrb[0].mxu0
    %343 = vdwg.mxu0
    %v344 = vxor.u32 %v341, 2147483648
    %v345 = vmul.f32 %v344, 1.442695
    %v346 = vpow.pop %v345
    %v347 = vadd.f32 %v346, 1.0
    %v348 = vrcp.pop %v347
    %v349 = vmul.f32 1.0, %v348
    %v350 = vld [vmem:[%s7] sm:$0xff]
    %v351 = vld [vmem:[%s7 + $0x8] sm:$0x3]
    %v352 = vld [vmem:[%s8] sm:$0x1]
    %v354 = vlaneseq
    %v355 = vshrl.u32 %v354, 7
    %v356 = vsub.s32 0, %v355
    %v357 = vrot.slane %v352, %v356
    %vm359 = vcmask 80896
    %v361 = vsel %vm359, %v349, 0
    %vm363 = vcmask 1041408
    %v365 = vsel %vm363, %v351, 0
    %367 = vmatprep.subr.mxu0 0.0
    %368 = vmatpush1.msra.mxu0 %v350
    %369 = vmatprep.subr.mxu0 0.0
    %370 = vmatpush1.msra.mxu0 %v365
    %371 = vmatprep.subr.mxu0 0.0
    %372 = vmatpush1.msra.mxu0 0.0
    %373 = vmatprep.subr.mxu0 0.0
    %374 = vmatpush1.msra.mxu0 0.0
    %375 = vmatprep.subr.mxu0 0.0
    %376 = vmatpush1.msra.mxu0 0.0
    %377 = vmatprep.subr.mxu0 0.0
    %378 = vmatpush1.msra.mxu0 0.0
    %379 = vmatprep.subr.mxu0 0.0
    %380 = vmatpush1.msra.mxu0 0.0
    %381 = vmatprep.subr.mxu0 0.0
    %382 = vmatpush1.msra.mxu0 0.0
    %383 = vmatprep.subr.mxu0 0.0
    %384 = vmatpush1.msra.mxu0 0.0
    %385 = vmatprep.subr.mxu0 0.0
    %386 = vmatpush1.msra.mxu0 0.0
    %387 = vmatprep.subr.mxu0 0.0
    %388 = vmatpush1.msra.mxu0 0.0
    %389 = vmatprep.subr.mxu0 0.0
    %390 = vmatpush1.msra.mxu0 0.0
    %391 = vmatprep.subr.mxu0 0.0
    %392 = vmatpush1.msra.mxu0 0.0
    %393 = vmatprep.subr.mxu0 0.0
    %394 = vmatpush1.msra.mxu0 0.0
    %395 = vmatprep.subr.mxu0 0.0
    %396 = vmatpush1.msra.mxu0 0.0
    %397 = vmatprep.subr.mxu0 0.0
    %398 = vmatpush1.msra.mxu0 0.0
    %399 = vmatprep.subr.mxu0 0.0
    %400 = vmatpush1.msra.mxu0 0.0
    %401 = vmatprep.subr.mxu0 0.0
    %402 = vmatpush1.msra.mxu0 0.0
    %403 = vmatprep.subr.mxu0 0.0
    %404 = vmatpush1.msra.mxu0 0.0
    %405 = vmatprep.subr.mxu0 0.0
    %406 = vmatpush1.msra.mxu0 0.0
    %407 = vmatprep.subr.mxu0 0.0
    %408 = vmatpush1.msra.mxu0 0.0
    %409 = vmatprep.subr.mxu0 0.0
    %410 = vmatpush1.msra.mxu0 0.0
    %411 = vmatprep.subr.mxu0 0.0
    %412 = vmatpush1.msra.mxu0 0.0
    %413 = vmatprep.subr.mxu0 0.0
    %414 = vmatpush1.msra.mxu0 0.0
    %415 = vmatprep.subr.mxu0 0.0
    %416 = vmatpush1.msra.mxu0 0.0
    %417 = vmatprep.subr.mxu0 0.0
    %418 = vmatpush1.msra.mxu0 0.0
    %419 = vmatprep.subr.mxu0 0.0
    %420 = vmatpush1.msra.mxu0 0.0
    %421 = vmatprep.subr.mxu0 0.0
    %422 = vmatpush1.msra.mxu0 0.0
    %423 = vmatprep.subr.mxu0 0.0
    %424 = vmatpush1.msra.mxu0 0.0
    %425 = vmatprep.subr.mxu0 0.0
    %426 = vmatpush1.msra.mxu0 0.0
    %427 = vmatprep.subr.mxu0 0.0
    %428 = vmatpush1.msra.mxu0 0.0
    %429 = vmatprep.subr.mxu0 0.0
    %430 = vmatpush1.msra.mxu0 0.0
    %431 = vmatprep.mubr.f32.mxu0 0.0
    %432 = vmatmul.mubr.f32.gmra.mrb[0].mxu0 %v361
    %v433 = vpop.f32.mrb[0].mxu0
    %v434 = vadd.f32 %v357, %v433
    %v435 = vpop.f32.mrb[0].mxu0
    %436 = vdwg.mxu0
    %v437 = vxor.u32 %v434, 2147483648
    %v438 = vmul.f32 %v437, 1.442695
    %v439 = vpow.pop %v438
    %v440 = vadd.f32 %v439, 1.0
    %v441 = vrcp.pop %v440
    %v442 = vmul.f32 1.0, %v441
    %v443 = vld [vmem:[%s9] sm:$0xff]
    %v444 = vld [vmem:[%s9 + $0x8] sm:$0x3]
    %v445 = vld [vmem:[%s10] sm:$0x1]
    %v447 = vlaneseq
    %v448 = vshrl.u32 %v447, 7
    %v449 = vsub.s32 0, %v448
    %v450 = vrot.slane %v445, %v449
    %v453 = vsel %vm359, %v442, 0
    %v456 = vsel %vm363, %v444, 0
    %458 = vmatprep.subr.mxu0 0.0
    %459 = vmatpush1.msra.mxu0 %v443
    %460 = vmatprep.subr.mxu0 0.0
    %461 = vmatpush1.msra.mxu0 %v456
    %462 = vmatprep.subr.mxu0 0.0
    %463 = vmatpush1.msra.mxu0 0.0
    %464 = vmatprep.subr.mxu0 0.0
    %465 = vmatpush1.msra.mxu0 0.0
    %466 = vmatprep.subr.mxu0 0.0
    %467 = vmatpush1.msra.mxu0 0.0
    %468 = vmatprep.subr.mxu0 0.0
    %469 = vmatpush1.msra.mxu0 0.0
    %470 = vmatprep.subr.mxu0 0.0
    %471 = vmatpush1.msra.mxu0 0.0
    %472 = vmatprep.subr.mxu0 0.0
    %473 = vmatpush1.msra.mxu0 0.0
    %474 = vmatprep.subr.mxu0 0.0
    %475 = vmatpush1.msra.mxu0 0.0
    %476 = vmatprep.subr.mxu0 0.0
    %477 = vmatpush1.msra.mxu0 0.0
    %478 = vmatprep.subr.mxu0 0.0
    %479 = vmatpush1.msra.mxu0 0.0
    %480 = vmatprep.subr.mxu0 0.0
    %481 = vmatpush1.msra.mxu0 0.0
    %482 = vmatprep.subr.mxu0 0.0
    %483 = vmatpush1.msra.mxu0 0.0
    %484 = vmatprep.subr.mxu0 0.0
    %485 = vmatpush1.msra.mxu0 0.0
    %486 = vmatprep.subr.mxu0 0.0
    %487 = vmatpush1.msra.mxu0 0.0
    %488 = vmatprep.subr.mxu0 0.0
    %489 = vmatpush1.msra.mxu0 0.0
    %490 = vmatprep.subr.mxu0 0.0
    %491 = vmatpush1.msra.mxu0 0.0
    %492 = vmatprep.subr.mxu0 0.0
    %493 = vmatpush1.msra.mxu0 0.0
    %494 = vmatprep.subr.mxu0 0.0
    %495 = vmatpush1.msra.mxu0 0.0
    %496 = vmatprep.subr.mxu0 0.0
    %497 = vmatpush1.msra.mxu0 0.0
    %498 = vmatprep.subr.mxu0 0.0
    %499 = vmatpush1.msra.mxu0 0.0
    %500 = vmatprep.subr.mxu0 0.0
    %501 = vmatpush1.msra.mxu0 0.0
    %502 = vmatprep.subr.mxu0 0.0
    %503 = vmatpush1.msra.mxu0 0.0
    %504 = vmatprep.subr.mxu0 0.0
    %505 = vmatpush1.msra.mxu0 0.0
    %506 = vmatprep.subr.mxu0 0.0
    %507 = vmatpush1.msra.mxu0 0.0
    %508 = vmatprep.subr.mxu0 0.0
    %509 = vmatpush1.msra.mxu0 0.0
    %510 = vmatprep.subr.mxu0 0.0
    %511 = vmatpush1.msra.mxu0 0.0
    %512 = vmatprep.subr.mxu0 0.0
    %513 = vmatpush1.msra.mxu0 0.0
    %514 = vmatprep.subr.mxu0 0.0
    %515 = vmatpush1.msra.mxu0 0.0
    %516 = vmatprep.subr.mxu0 0.0
    %517 = vmatpush1.msra.mxu0 0.0
    %518 = vmatprep.subr.mxu0 0.0
    %519 = vmatpush1.msra.mxu0 0.0
    %520 = vmatprep.subr.mxu0 0.0
    %521 = vmatpush1.msra.mxu0 0.0
    %522 = vmatprep.mubr.f32.mxu0 0.0
    %523 = vmatmul.mubr.f32.gmra.mrb[0].mxu0 %v453
    %v524 = vpop.f32.mrb[0].mxu0
    %v525 = vadd.f32 %v450, %v524
    %v526 = vpop.f32.mrb[0].mxu0
    %527 = vdwg.mxu0
    %v528 = vxor.u32 %v525, 2147483648
    %v529 = vmul.f32 %v528, 1.442695
    %v530 = vpow.pop %v529
    %v531 = vadd.f32 %v530, 1.0
    %v532 = vrcp.pop %v531
    %v533 = vmul.f32 1.0, %v532
    %v534 = vsel %vm359, %v533, -inf
    %535 = vmax.xlane.f32.xlu0 %v534
    %v536 = vpop.xlane.xlu0 %535
    %v537 = vsub.f32 %v533, %v536
    %v538 = vmul.f32 %v537, 1.442695
    %v539 = vpow.pop %v538
    %v540 = vsel %vm359, %v539, 0.0
    %541 = vadd.xlane.f32.xlu0 %v540
    %v542 = vpop.xlane.xlu0 %541
    %v543 = vlog2.pop %v542
    %v544 = vmul.f32 %v543, 0.6931472
    %v545 = vsub.f32 %v537, %v544
    %v546 = vsel %vm359, %v545, 0.0
    %547 = vst [vmem:[#allocation2] sm:$0xff] %v546
    // Predicated region
    $region46: #{firstnet_forward.1} parent=1 // pred_check
      _
    $region47: #{firstnet_forward.1} parent=1 // pred_check_branch
      %549 = sbr.rel (0) target = $region49
    $region48: #{firstnet_forward.1} parent=1 // pred_region
      %s551 = ssub.s32 128, 128
      %552 = vsyncadd [#allocation3], %s551
      %s554 = sshll.u32 [#allocation2], 4
      %s555 = int_to_ptr.vmem [resolvable:$true] %s554
      %557 = dma.vmem_to_hbm [thread:$0]  %s555, 128, %s11, [#allocation3]
    $region49: #{firstnet_forward.1} parent=1 // pred_fallthru
      _
    // Predicated region
    $region50: #{firstnet_forward.1} parent=1 // pred_check
      _
    $region51: #{firstnet_forward.1} parent=1 // pred_check_branch
      %559 = sbr.rel (0) target = $region53
    $region52: #{firstnet_forward.1} parent=1 // pred_region
      %560 = dma.done [#allocation3], 128
    $region53: #{firstnet_forward.1} parent=1 // pred_fallthru
      _
    %561 = vsyncpa [#allocation3], 1

</llo_original>
